<compile_context>
chip_gen: v5e
topology: v5e:2x2
jax: 0.10.0
libtpu: 0.0.40
codegen_flags: <defaults>
</compile_context>

<pallas_src>
import functools
import math

import jax
import jax.numpy as jnp
from jax import lax
from jax.experimental import pallas as pl
from jax.experimental.pallas import tpu as pltpu

LN_EPS = 1e-5


def temporal_preprocess_kernel(x_ref, w_ref, bc_ref, g_ref, be_ref, out_ref,
                               *, kernel_size):
    nb, d_model, seq_len = x_ref.shape
    pad = kernel_size // 2
    n_rows = nb * seq_len

    # ---- load + transpose: channels -> lanes, (batch, time) -> sublanes ----
    # One small XLU transpose per batch element (known-good 2-D transpose);
    # concatenating along sublanes is cheap (offsets are 8-aligned for the
    # shapes used here).  All math is f32 regardless of the I/O dtype.
    slabs = [jnp.transpose(x_ref[n].astype(jnp.float32)) for n in range(nb)]
    xt = slabs[0] if nb == 1 else jnp.concatenate(slabs, axis=0)   # [NB*L, D]

    # Local time index of every row, hoisted out of the tap loop.
    row = lax.broadcasted_iota(jnp.int32, (seq_len, d_model), 0)
    t = row if nb == 1 else jnp.concatenate([row] * nb, axis=0)    # [NB*L, D]

    # Hoisted parameter loads (reused by every tap).
    w = w_ref[...].astype(jnp.float32)        # [K, D]
    bc = bc_ref[...].astype(jnp.float32)      # [1, D]
    g = g_ref[...].astype(jnp.float32)        # [1, D]
    be = be_ref[...].astype(jnp.float32)      # [1, D]

    # ---- depthwise conv: K-tap unrolled loop, rolls on the XLU slot ----
    acc = xt * w[pad:pad + 1, :]              # center tap: no roll, no mask
    for k in range(kernel_size):
        d = k - pad                           # time offset of this tap
        if d == 0:
            continue
        # term[r, c] = xt[r + d, c] while the *local* time index stays inside
        # [0, L); rows that would cross a batch boundary (or the sequence edge)
        # are exactly the conv's zero padding, so folding batches into the
        # sublane axis is safe.
        rolled = pltpu.roll(xt, shift=(-d) % n_rows, axis=0)
        if d > 0:
            valid = t < (seq_len - d)
        else:
            valid = t >= (-d)
        acc = acc + jnp.where(valid, rolled, 0.0) * w[k:k + 1, :]

    acc = acc + bc                            # conv bias

    # ---- LayerNorm over d_model (lane axis), biased variance like torch ----
    # sum / sum-of-squares form: the two lane reductions are independent.
    inv_d = jnp.float32(1.0 / d_model)
    mu = jnp.sum(acc, axis=-1, keepdims=True) * inv_d
    ex2 = jnp.sum(acc * acc, axis=-1, keepdims=True) * inv_d
    var = jnp.maximum(ex2 - mu * mu, 0.0)     # guard mild cancellation
    y = (acc - mu) * lax.rsqrt(var + LN_EPS) * g + be

    out_ref[...] = y.reshape(nb, seq_len, d_model).astype(out_ref.dtype)


def _pick_batch_block(batch, per_batch_bytes, target_bytes=2 << 20):
    """Largest divisor of `batch` whose block stays near `target_bytes`, while
    keeping >= 2 grid steps when batch >= 2 (feeds both TCs on megacore/v7x)."""
    nb = max(1, min(batch, target_bytes // max(per_batch_bytes, 1)))
    while batch % nb:
        nb -= 1
    if batch >= 2:
        nb = min(nb, max(1, batch // 2))
        while batch % nb:
            nb -= 1
    return nb


def temporal_preprocess(x, params, kernel_size=3):
    B, D, L = x.shape
    K = kernel_size
    # PyTorch Conv1d with padding=K//2 changes the output length for even K;
    # only the odd-K (length-preserving) case is supported here.
    assert K % 2 == 1, "kernel_size must be odd (torch padding=K//2 keeps length only for odd K)"
    assert params["w"].shape == (K, D)

    itemsize = jnp.dtype(x.dtype).itemsize
    per_batch_bytes = D * L * itemsize * 2            # one read + one write
    NB = _pick_batch_block(B, per_batch_bytes)
    grid = (B // NB,)

    # VMEM budget: 2x double-buffered in + out blocks plus in-kernel temporaries.
    blk_bytes = NB * per_batch_bytes
    vmem_limit = int(min(64 << 20, max(32 << 20, 12 * blk_bytes)))

    const2d = lambda shp: pl.BlockSpec(shp, lambda b: (0, 0))
    in_specs = [
        pl.BlockSpec((NB, D, L), lambda b: (b, 0, 0)),   # x (NB batch elements)
        const2d((K, D)),                                 # depthwise conv weight [K, D]
        const2d((1, D)),                                 # conv bias
        const2d((1, D)),                                 # LN gamma
        const2d((1, D)),                                 # LN beta
    ]
    out_specs = pl.BlockSpec((NB, L, D), lambda b: (b, 0, 0))
    out_shape = jax.ShapeDtypeStruct((B, L, D), x.dtype)

    cost = pl.CostEstimate(
        flops=int(B * L * D * (2 * K + 10)),
        transcendentals=int(B * L),
        bytes_accessed=int(B * D * L * itemsize * 2 + (K + 3) * D * 4),
    )

    fn = pl.pallas_call(
        functools.partial(temporal_preprocess_kernel, kernel_size=K),
        out_shape=out_shape,
        grid_spec=pltpu.PrefetchScalarGridSpec(
            num_scalar_prefetch=0,
            grid=grid,
            in_specs=in_specs,
            out_specs=out_specs,
        ),
        compiler_params=pltpu.CompilerParams(
            dimension_semantics=("parallel",),
            vmem_limit_bytes=vmem_limit,
        ),
        cost_estimate=cost,
    )
    return fn(x, params["w"], params["bconv"], params["gamma"], params["beta"])


# ------------------------- pure-JAX reference -----------------------------
def temporal_preprocess_ref(x, p, kernel_size=3):
    B, D, L = x.shape
    pad = kernel_size // 2
    xp = jnp.pad(x, ((0, 0), (0, 0), (pad, pad)))
    y = jnp.zeros((B, D, L), jnp.float32)
    for k in range(kernel_size):
        y = y + xp[:, :, k:k + L] * p["w"][k][None, :, None]
    y = y + p["bconv"][0][None, :, None]
    y = jnp.transpose(y, (0, 2, 1))              # [B, L, D]
    mu = jnp.mean(y, axis=-1, keepdims=True)
    var = jnp.mean((y - mu) ** 2, axis=-1, keepdims=True)
    return (y - mu) * lax.rsqrt(var + LN_EPS) * p["gamma"][0] + p["beta"][0]


def make_params(key, d_model, kernel_size):
    kw, kb, kg, ke = jax.random.split(key, 4)
    # NOTE: PyTorch depthwise Conv1d weight is [d_model, 1, K]; to import a real
    # checkpoint use w = torch_w[:, 0, :].T  -> stored here as [K, d_model].
    return {
        "w": jax.random.normal(kw, (kernel_size, d_model), jnp.float32)
             * (1.0 / math.sqrt(kernel_size)),
        "bconv": jax.random.normal(kb, (1, d_model), jnp.float32) * 0.02,
        "gamma": 1.0 + 0.1 * jax.random.normal(kg, (1, d_model), jnp.float32),
        "beta": 0.05 * jax.random.normal(ke, (1, d_model), jnp.float32),
    }


if __name__ == "__main__":
    B, D, L, K = 4, 32, 16, 3            # batch, d_model, seq_len, kernel_size

    key = jax.random.PRNGKey(0)
    kx, kp = jax.random.split(key)
    x = jax.random.normal(kx, (B, D, L), jnp.float32)   # [B, d_model, L] (NCL)
    params = make_params(kp, D, K)

    out = temporal_preprocess(x, params, kernel_size=K)
    jax.block_until_ready(out)

    ref = temporal_preprocess_ref(x, params, kernel_size=K)
    assert out.shape == (B, L, D)
    assert jnp.allclose(out, ref, atol=1e-4, rtol=1e-4)

    print("KERNEL_OK")
</pallas_src>

<mosaic_0001>
module attributes {stable_mosaic.version = 11 : i64} {
  func.func @temporal_preprocess_kernel(%arg0: i32, %arg1: memref<2x32x16xf32, #tpu.memory_space<vmem>>, %arg2: memref<3x32xf32, #tpu.memory_space<vmem>>, %arg3: memref<1x32xf32, #tpu.memory_space<vmem>>, %arg4: memref<1x32xf32, #tpu.memory_space<vmem>>, %arg5: memref<1x32xf32, #tpu.memory_space<vmem>>, %arg6: memref<2x16x32xf32, #tpu.memory_space<vmem>>) attributes {dimension_semantics = [#tpu.dimension_semantics<parallel>], iteration_bounds = array<i64: 2>, scalar_prefetch = 0 : i64, scratch_operands = 0 : i64, tpu.core_type = #tpu.core_type<tc>, window_params = [{transform_indices = @transform_0, window_bounds = array<i64: 2, 32, 16>}, {pipeline_mode = #tpu.pipeline_mode<synchronous>, transform_indices = @transform_1, window_bounds = array<i64: 3, 32>}, {pipeline_mode = #tpu.pipeline_mode<synchronous>, transform_indices = @transform_2, window_bounds = array<i64: 1, 32>}, {pipeline_mode = #tpu.pipeline_mode<synchronous>, transform_indices = @transform_3, window_bounds = array<i64: 1, 32>}, {pipeline_mode = #tpu.pipeline_mode<synchronous>, transform_indices = @transform_4, window_bounds = array<i64: 1, 32>}, {transform_indices = @transform_5, window_bounds = array<i64: 2, 16, 32>}]} {
    %c0 = arith.constant 0 : index
    %c0_0 = arith.constant 0 : index
    %c0_1 = arith.constant 0 : index
    %0 = vector.load %arg1[%c0, %c0_0, %c0_1] : memref<2x32x16xf32, #tpu.memory_space<vmem>>, vector<1x32x16xf32>
    %1 = vector.shape_cast %0 : vector<1x32x16xf32> to vector<32x16xf32>
    %2 = tpu.transpose %1, [1, 0] : vector<32x16xf32> -> vector<16x32xf32>
    %c1 = arith.constant 1 : index
    %c0_2 = arith.constant 0 : index
    %c0_3 = arith.constant 0 : index
    %3 = vector.load %arg1[%c1, %c0_2, %c0_3] : memref<2x32x16xf32, #tpu.memory_space<vmem>>, vector<1x32x16xf32>
    %4 = vector.shape_cast %3 : vector<1x32x16xf32> to vector<32x16xf32>
    %5 = tpu.transpose %4, [1, 0] : vector<32x16xf32> -> vector<16x32xf32>
    %6 = tpu.concatenate %2, %5 in 0 : vector<16x32xf32>, vector<16x32xf32> -> vector<32x32xf32>
    %7 = tpu.iota {dimensions = array<i32: 0>} : vector<16x32xi32>
    %8 = tpu.concatenate %7, %7 in 0 : vector<16x32xi32>, vector<16x32xi32> -> vector<32x32xi32>
    %c0_4 = arith.constant 0 : index
    %c0_5 = arith.constant 0 : index
    %9 = vector.load %arg2[%c0_4, %c0_5] : memref<3x32xf32, #tpu.memory_space<vmem>>, vector<3x32xf32>
    %c0_6 = arith.constant 0 : index
    %c0_7 = arith.constant 0 : index
    %10 = vector.load %arg3[%c0_6, %c0_7] : memref<1x32xf32, #tpu.memory_space<vmem>>, vector<1x32xf32>
    %c0_8 = arith.constant 0 : index
    %c0_9 = arith.constant 0 : index
    %11 = vector.load %arg4[%c0_8, %c0_9] : memref<1x32xf32, #tpu.memory_space<vmem>>, vector<1x32xf32>
    %c0_10 = arith.constant 0 : index
    %c0_11 = arith.constant 0 : index
    %12 = vector.load %arg5[%c0_10, %c0_11] : memref<1x32xf32, #tpu.memory_space<vmem>>, vector<1x32xf32>
    %13 = vector.extract_strided_slice %9 {offsets = [1, 0], sizes = [1, 32], strides = [1, 1]} : vector<3x32xf32> to vector<1x32xf32>
    %14 = vector.broadcast %13 : vector<1x32xf32> to vector<32x32xf32>
    %15 = arith.mulf %6, %14 : vector<32x32xf32>
    %c1_i32 = arith.constant 1 : i32
    %16 = tpu.dynamic_rotate %6 by %c1_i32 dim 0 : vector<32x32xf32>, i32 -> vector<32x32xf32>
    %c1_i32_12 = arith.constant 1 : i32
    %17 = vector.broadcast %c1_i32_12 : i32 to vector<32x32xi32>
    %18 = arith.cmpi sge, %8, %17 : vector<32x32xi32>
    %cst = arith.constant 0.000000e+00 : f32
    %19 = vector.broadcast %cst : f32 to vector<32x32xf32>
    %20 = arith.select %18, %16, %19 : vector<32x32xi1>, vector<32x32xf32>
    %21 = vector.extract_strided_slice %9 {offsets = [0, 0], sizes = [1, 32], strides = [1, 1]} : vector<3x32xf32> to vector<1x32xf32>
    %22 = vector.broadcast %21 : vector<1x32xf32> to vector<32x32xf32>
    %23 = arith.mulf %20, %22 : vector<32x32xf32>
    %24 = arith.addf %15, %23 : vector<32x32xf32>
    %c31_i32 = arith.constant 31 : i32
    %25 = tpu.dynamic_rotate %6 by %c31_i32 dim 0 : vector<32x32xf32>, i32 -> vector<32x32xf32>
    %c15_i32 = arith.constant 15 : i32
    %26 = vector.broadcast %c15_i32 : i32 to vector<32x32xi32>
    %27 = arith.cmpi slt, %8, %26 : vector<32x32xi32>
    %cst_13 = arith.constant 0.000000e+00 : f32
    %28 = vector.broadcast %cst_13 : f32 to vector<32x32xf32>
    %29 = arith.select %27, %25, %28 : vector<32x32xi1>, vector<32x32xf32>
    %30 = vector.extract_strided_slice %9 {offsets = [2, 0], sizes = [1, 32], strides = [1, 1]} : vector<3x32xf32> to vector<1x32xf32>
    %31 = vector.broadcast %30 : vector<1x32xf32> to vector<32x32xf32>
    %32 = arith.mulf %29, %31 : vector<32x32xf32>
    %33 = arith.addf %24, %32 : vector<32x32xf32>
    %34 = vector.broadcast %10 : vector<1x32xf32> to vector<32x32xf32>
    %35 = arith.addf %33, %34 : vector<32x32xf32>
    %cst_14 = arith.constant dense<0.000000e+00> : vector<32xf32>
    %36 = vector.multi_reduction <add>, %35, %cst_14 [1] : vector<32x32xf32> to vector<32xf32>
    %37 = vector.shape_cast %36 : vector<32xf32> to vector<32x1xf32>
    %cst_15 = arith.constant 3.125000e-02 : f32
    %38 = vector.broadcast %cst_15 : f32 to vector<32x1xf32>
    %39 = arith.mulf %37, %38 : vector<32x1xf32>
    %40 = arith.mulf %35, %35 : vector<32x32xf32>
    %cst_16 = arith.constant dense<0.000000e+00> : vector<32xf32>
    %41 = vector.multi_reduction <add>, %40, %cst_16 [1] : vector<32x32xf32> to vector<32xf32>
    %42 = vector.shape_cast %41 : vector<32xf32> to vector<32x1xf32>
    %cst_17 = arith.constant 3.125000e-02 : f32
    %43 = vector.broadcast %cst_17 : f32 to vector<32x1xf32>
    %44 = arith.mulf %42, %43 : vector<32x1xf32>
    %45 = arith.mulf %39, %39 : vector<32x1xf32>
    %46 = arith.subf %44, %45 : vector<32x1xf32>
    %cst_18 = arith.constant 0.000000e+00 : f32
    %47 = vector.broadcast %cst_18 : f32 to vector<32x1xf32>
    %48 = arith.maximumf %46, %47 : vector<32x1xf32>
    %49 = vector.broadcast %39 : vector<32x1xf32> to vector<32x32xf32>
    %50 = arith.subf %35, %49 : vector<32x32xf32>
    %cst_19 = arith.constant 9.99999974E-6 : f32
    %51 = vector.broadcast %cst_19 : f32 to vector<32x1xf32>
    %52 = arith.addf %48, %51 : vector<32x1xf32>
    %53 = math.rsqrt %52 : vector<32x1xf32>
    %54 = vector.broadcast %53 : vector<32x1xf32> to vector<32x32xf32>
    %55 = arith.mulf %50, %54 : vector<32x32xf32>
    %56 = vector.broadcast %11 : vector<1x32xf32> to vector<32x32xf32>
    %57 = arith.mulf %55, %56 : vector<32x32xf32>
    %58 = vector.broadcast %12 : vector<1x32xf32> to vector<32x32xf32>
    %59 = arith.addf %57, %58 : vector<32x32xf32>
    %60 = vector.shape_cast %59 : vector<32x32xf32> to vector<2x16x32xf32>
    %c0_20 = arith.constant 0 : index
    %c0_21 = arith.constant 0 : index
    %c0_22 = arith.constant 0 : index
    %61 = vector.load %arg6[%c0_20, %c0_21, %c0_22] : memref<2x16x32xf32, #tpu.memory_space<vmem>>, vector<2x16x32xf32>
    tpu.vector_store %arg6[%c0_20, %c0_21, %c0_22], %60 {strides = array<i32>} : memref<2x16x32xf32, #tpu.memory_space<vmem>>, vector<2x16x32xf32>,
    return
  }
  func.func @transform_0(%arg0: i32) -> (i32, i32, i32) {
    %c0_i32 = arith.constant 0 : i32
    %c0_i32_0 = arith.constant 0 : i32
    %c0_i32_1 = arith.constant 0 : i32
    return %arg0, %c0_i32, %c0_i32_0 : i32, i32, i32
  }
  func.func @transform_1(%arg0: i32) -> (i32, i32) {
    %c0_i32 = arith.constant 0 : i32
    %c0_i32_0 = arith.constant 0 : i32
    %c0_i32_1 = arith.constant 0 : i32
    return %c0_i32, %c0_i32_0 : i32, i32
  }
  func.func @transform_2(%arg0: i32) -> (i32, i32) {
    %c0_i32 = arith.constant 0 : i32
    %c0_i32_0 = arith.constant 0 : i32
    %c0_i32_1 = arith.constant 0 : i32
    return %c0_i32, %c0_i32_0 : i32, i32
  }
  func.func @transform_3(%arg0: i32) -> (i32, i32) {
    %c0_i32 = arith.constant 0 : i32
    %c0_i32_0 = arith.constant 0 : i32
    %c0_i32_1 = arith.constant 0 : i32
    return %c0_i32, %c0_i32_0 : i32, i32
  }
  func.func @transform_4(%arg0: i32) -> (i32, i32) {
    %c0_i32 = arith.constant 0 : i32
    %c0_i32_0 = arith.constant 0 : i32
    %c0_i32_1 = arith.constant 0 : i32
    return %c0_i32, %c0_i32_0 : i32, i32
  }
  func.func @transform_5(%arg0: i32) -> (i32, i32, i32) {
    %c0_i32 = arith.constant 0 : i32
    %c0_i32_0 = arith.constant 0 : i32
    %c0_i32_1 = arith.constant 0 : i32
    return %arg0, %c0_i32, %c0_i32_0 : i32, i32, i32
  }
}

</mosaic_0001>

<llo_original>
// kernel: tpu_custom_call.1
$region0: #{tpu_custom_call.1}
  #allocation0 [shape = 'u32[]', space=smem, size = 0x4, offset = 0x4, fixed_abs, tag = 'smem constant byte address 0x4 - core index']
  #allocation1 [shape = 'u32[72,128]{1,0:T(1,128)}', space=vmem, size = 0x9000, scoped, tag = 'internal scratch']
  %s0 = inlined_call_operand.vmem [shape: f32[4,32,16], index: 0, kind: input, shape index: {}]
  %s1 = inlined_call_operand.vmem [shape: f32[3,32], index: 1, kind: input, shape index: {}]
  %s2 = inlined_call_operand.vmem [shape: f32[1,32], index: 2, kind: input, shape index: {}]
  %s3 = inlined_call_operand.vmem [shape: f32[1,32], index: 3, kind: input, shape index: {}]
  %s4 = inlined_call_operand.vmem [shape: f32[1,32], index: 4, kind: input, shape index: {}]
  %s5 = inlined_call_operand.hbm [shape: f32[4,16,32], index: 5, kind: output, shape index: {}]
  %s6 = sld [smem:[#allocation0]]
  $region53: #{tpu_custom_call.1} parent=0
    _
  %s8 = ssub.s32 1, %s6
  %s9 = scalar_select 0, %s8, %s6
  $region1: #{tpu_custom_call.1} parent=0
    #allocation2 [shape = 'u8[32768]{0}', space=vmem, size = 0x8000, scoped, tag = 'output window, operand 0']
    #allocation3 [shape = 's32[2]{0}', space=sflag, size = 0x8, scoped, tag = 'scoped memory for tpu_custom_call.1']
    %10 = vsyncpa [#allocation3], 0
    %s11 = scalar_lea.sflag [#allocation3], 1
    %12 = vsyncpa %s11, 0
    loop: start=0, step=1, limit=4
    $region2: #{tpu_custom_call.1} parent=1 // loop_pre_header
      _
    $region3: #{tpu_custom_call.1} parent=1 // loop_header
      %s14 = sphi 0, %s18
      %p15 = scmp.ge.s32.totalorder %s14, 4
      %s24 = sphi 0, %s26
      %s27 = sphi 0, %s24
      %s28 = sphi 0, %s27
      %s44 = sphi 0, %s28
      %s48 = sphi 0, %s48
      %s50 = sphi 0, %s48
      %s51 = sphi 0, %s50
      %s65 = sphi 0, %s51
      %s69 = sphi 0, %s69
      %s71 = sphi 0, %s69
      %s72 = sphi 0, %s71
      %s86 = sphi 0, %s72
      %s90 = sphi 0, %s90
      %s92 = sphi 0, %s90
      %s93 = sphi 0, %s92
      %s107 = sphi 0, %s93
      %s111 = sphi 0, %s111
      %s113 = sphi 0, %s111
      %s114 = sphi 0, %s113
      %s128 = sphi 0, %s114
      %s134 = sphi 0, %s136
      %s137 = sphi 0, %s134
      %s138 = sphi 0, %s137
      %s154 = sphi 0, %s138
    $region4: #{tpu_custom_call.1} parent=1 // loop_header_branch
      %17 = sbr.rel (%p15) target = $region8
    $region5: #{tpu_custom_call.1} parent=1 // loop_body
      %s19 = ssub.s32 %s14, 1
      %s20 = ssub.s32 %s14, 2
      %s21 = sadd.s32 %s14, 1
      %s22 = ssub.s32 %s14, %s21
      %p23 = scmp.eq.s32.totalorder %s22, 0
      %s25 = sadd.s32 %s24, 1
      %s26 = scalar_select %p23, %s24, %s25
      %p29 = pneg %p23
      %p30 = scmp.eq.s32.totalorder %s14, 1
      %p31 = por %p29, %p30
      %p32 = scmp.ne.s32.totalorder %s24, %s27
      %p33 = scmp.eq.s32.totalorder %s14, 0
      %p34 = por %p32, %p33
      %p35 = scmp.ne.s32.totalorder %s24, %s27
      %p36 = scmp.eq.s32.totalorder %s19, 1
      %p37 = por %p35, %p36
      %p38 = scmp.ne.s32.totalorder %s27, %s28
      %p39 = scmp.eq.s32.totalorder %s19, 0
      %p40 = por %p38, %p39
      %p41 = scmp.ne.s32.totalorder %s27, %s28
      %p42 = scmp.eq.s32.totalorder %s20, 1
      %p43 = por %p41, %p42
      %p45 = scmp.ne.s32.totalorder %s28, %s44
      %p46 = scmp.eq.s32.totalorder %s20, 0
      %p47 = por %p45, %p46
      %s49 = sadd.s32 %s48, 1
      %p52 = scmp.eq.s32.totalorder %s14, 1
      %p53 = scmp.ne.s32.totalorder %s48, %s50
      %p54 = scmp.eq.s32.totalorder %s14, 0
      %p55 = por %p53, %p54
      %p56 = scmp.ne.s32.totalorder %s48, %s50
      %p57 = scmp.eq.s32.totalorder %s19, 1
      %p58 = por %p56, %p57
      %p59 = scmp.ne.s32.totalorder %s50, %s51
      %p60 = scmp.eq.s32.totalorder %s19, 0
      %p61 = por %p59, %p60
      %p62 = scmp.ne.s32.totalorder %s50, %s51
      %p63 = scmp.eq.s32.totalorder %s20, 1
      %p64 = por %p62, %p63
      %p66 = scmp.ne.s32.totalorder %s51, %s65
      %p67 = scmp.eq.s32.totalorder %s20, 0
      %p68 = por %p66, %p67
      %s70 = sadd.s32 %s69, 1
      %p73 = scmp.eq.s32.totalorder %s14, 1
      %p74 = scmp.ne.s32.totalorder %s69, %s71
      %p75 = scmp.eq.s32.totalorder %s14, 0
      %p76 = por %p74, %p75
      %p77 = scmp.ne.s32.totalorder %s69, %s71
      %p78 = scmp.eq.s32.totalorder %s19, 1
      %p79 = por %p77, %p78
      %p80 = scmp.ne.s32.totalorder %s71, %s72
      %p81 = scmp.eq.s32.totalorder %s19, 0
      %p82 = por %p80, %p81
      %p83 = scmp.ne.s32.totalorder %s71, %s72
      %p84 = scmp.eq.s32.totalorder %s20, 1
      %p85 = por %p83, %p84
      %p87 = scmp.ne.s32.totalorder %s72, %s86
      %p88 = scmp.eq.s32.totalorder %s20, 0
      %p89 = por %p87, %p88
      %s91 = sadd.s32 %s90, 1
      %p94 = scmp.eq.s32.totalorder %s14, 1
      %p95 = scmp.ne.s32.totalorder %s90, %s92
      %p96 = scmp.eq.s32.totalorder %s14, 0
      %p97 = por %p95, %p96
      %p98 = scmp.ne.s32.totalorder %s90, %s92
      %p99 = scmp.eq.s32.totalorder %s19, 1
      %p100 = por %p98, %p99
      %p101 = scmp.ne.s32.totalorder %s92, %s93
      %p102 = scmp.eq.s32.totalorder %s19, 0
      %p103 = por %p101, %p102
      %p104 = scmp.ne.s32.totalorder %s92, %s93
      %p105 = scmp.eq.s32.totalorder %s20, 1
      %p106 = por %p104, %p105
      %p108 = scmp.ne.s32.totalorder %s93, %s107
      %p109 = scmp.eq.s32.totalorder %s20, 0
      %p110 = por %p108, %p109
      %s112 = sadd.s32 %s111, 1
      %p115 = scmp.eq.s32.totalorder %s14, 1
      %p116 = scmp.ne.s32.totalorder %s111, %s113
      %p117 = scmp.eq.s32.totalorder %s14, 0
      %p118 = por %p116, %p117
      %p119 = scmp.ne.s32.totalorder %s111, %s113
      %p120 = scmp.eq.s32.totalorder %s19, 1
      %p121 = por %p119, %p120
      %p122 = scmp.ne.s32.totalorder %s113, %s114
      %p123 = scmp.eq.s32.totalorder %s19, 0
      %p124 = por %p122, %p123
      %p125 = scmp.ne.s32.totalorder %s113, %s114
      %p126 = scmp.eq.s32.totalorder %s20, 1
      %p127 = por %p125, %p126
      %p129 = scmp.ne.s32.totalorder %s114, %s128
      %p130 = scmp.eq.s32.totalorder %s20, 0
      %p131 = por %p129, %p130
      %s132 = ssub.s32 %s14, %s21
      %p133 = scmp.eq.s32.totalorder %s132, 0
      %s135 = sadd.s32 %s134, 1
      %s136 = scalar_select %p133, %s134, %s135
      %p139 = pneg %p133
      %p140 = scmp.eq.s32.totalorder %s14, 1
      %p141 = por %p139, %p140
      %p142 = scmp.ne.s32.totalorder %s134, %s137
      %p143 = scmp.eq.s32.totalorder %s14, 0
      %p144 = por %p142, %p143
      %p145 = scmp.ne.s32.totalorder %s134, %s137
      %p146 = scmp.eq.s32.totalorder %s19, 1
      %p147 = por %p145, %p146
      %p148 = scmp.ne.s32.totalorder %s137, %s138
      %p149 = scmp.eq.s32.totalorder %s19, 0
      %p150 = por %p148, %p149
      %p151 = scmp.ne.s32.totalorder %s137, %s138
      %p152 = scmp.eq.s32.totalorder %s20, 1
      %p153 = por %p151, %p152
      %p155 = scmp.ne.s32.totalorder %s138, %s154
      %p156 = scmp.eq.s32.totalorder %s20, 0
      %p157 = por %p155, %p156
      %p158 = scmp.le.s32.totalorder 1, %s14
      %p159 = scmp.lt.s32.totalorder %s14, 3
      %p160 = pnand %p158, %p159
      %p161 = pneg %p160
      // Predicated region
      $region9: #{tpu_custom_call.1} parent=5 // pred_check
        _
      $region10: #{tpu_custom_call.1} parent=5 // pred_check_branch
        %163 = sbr.rel (%p160) target = $region12
      $region11: #{tpu_custom_call.1} parent=5 // pred_region
        %s164 = ssub.s32 %s14, 1
        // Predicated region
        $region13: #{tpu_custom_call.1} parent=11 // pred_check
          %p165 = pneg %p61
        $region14: #{tpu_custom_call.1} parent=11 // pred_check_branch
          %167 = sbr.rel (%p165) target = $region16
        $region15: #{tpu_custom_call.1} parent=11 // pred_region
          _
        $region16: #{tpu_custom_call.1} parent=11 // pred_fallthru
          _
        // Predicated region
        $region17: #{tpu_custom_call.1} parent=11 // pred_check
          %p168 = pneg %p82
        $region18: #{tpu_custom_call.1} parent=11 // pred_check_branch
          %170 = sbr.rel (%p168) target = $region20
        $region19: #{tpu_custom_call.1} parent=11 // pred_region
          _
        $region20: #{tpu_custom_call.1} parent=11 // pred_fallthru
          _
        // Predicated region
        $region21: #{tpu_custom_call.1} parent=11 // pred_check
          %p171 = pneg %p103
        $region22: #{tpu_custom_call.1} parent=11 // pred_check_branch
          %173 = sbr.rel (%p171) target = $region24
        $region23: #{tpu_custom_call.1} parent=11 // pred_region
          _
        $region24: #{tpu_custom_call.1} parent=11 // pred_fallthru
          _
        // Predicated region
        $region25: #{tpu_custom_call.1} parent=11 // pred_check
          %p174 = pneg %p124
        $region26: #{tpu_custom_call.1} parent=11 // pred_check_branch
          %176 = sbr.rel (%p174) target = $region28
        $region27: #{tpu_custom_call.1} parent=11 // pred_region
          _
        $region28: #{tpu_custom_call.1} parent=11 // pred_fallthru
          _
      $region12: #{tpu_custom_call.1} parent=5 // pred_fallthru
        _
      %p177 = scmp.lt.s32.totalorder %s14, 2
      // Predicated region
      $region29: #{tpu_custom_call.1} parent=5 // pred_check
        %p178 = pneg %p177
      $region30: #{tpu_custom_call.1} parent=5 // pred_check_branch
        %180 = sbr.rel (%p178) target = $region32
      $region31: #{tpu_custom_call.1} parent=5 // pred_region
        // Predicated region
        $region33: #{tpu_custom_call.1} parent=31 // pred_check
          %p181 = pneg %p34
        $region34: #{tpu_custom_call.1} parent=31 // pred_check_branch
          %183 = sbr.rel (%p181) target = $region36
        $region35: #{tpu_custom_call.1} parent=31 // pred_region
          %s184 = smul.u32 2, %s14
          %p185 = scmp.lt.s32.totalorder %s184, 3
          %s186 = scalar_select %p185, %s184, 3
          %s187 = smul.addr %s186, 4
          %s188 = smul.addr %s187, 8
          %s189 = scalar_lea.vmem %s0, %s188
          %s190 = smul.u32 2, %s14
        $region36: #{tpu_custom_call.1} parent=31 // pred_fallthru
          _
      $region32: #{tpu_custom_call.1} parent=5 // pred_fallthru
        _
      %p191 = scmp.le.s32.totalorder 1, %s14
      %p192 = scmp.lt.s32.totalorder %s14, 3
      %p193 = pnand %p191, %p192
      %p194 = pneg %p193
      // Predicated region
      $region37: #{tpu_custom_call.1} parent=5 // pred_check
        _
      $region38: #{tpu_custom_call.1} parent=5 // pred_check_branch
        %196 = sbr.rel (%p193) target = $region40
      $region39: #{tpu_custom_call.1} parent=5 // pred_region
        %s197 = ssub.s32 %s14, 1
        %s198 = smul.u32 2, %s19
        %p199 = scmp.lt.s32.totalorder %s198, 3
        %s200 = scalar_select %p199, %s198, 3
        %s201 = smul.addr %s200, 4
        %s202 = smul.addr %s201, 8
        %s203 = scalar_lea.vmem %s0, %s202
        %p204 = pneg %p40
        %p205 = pneg %p37
        %p206 = pneg %p61
        %p207 = pneg %p58
        %p208 = pneg %p82
        %p209 = pneg %p79
        %p210 = pneg %p103
        %p211 = pneg %p100
        %p212 = pneg %p124
        %p213 = pneg %p121
        %p214 = pneg %p150
        %p215 = pneg %p147
        %s216 = sand.u32 %s137, 1
        %s217 = scalar_lea.sflag [#allocation3], %s216
        %s218 = sand.u32 %s137, 1
        %s219 = smul.addr %s218, 32
        %s220 = scalar_lea.vmem [#allocation2], %s219
        %s221 = smul.u32 2, %s19
        %p222 = scmp.lt.s32.totalorder %s221, 3
        %s223 = scalar_select %p222, %s221, 3
        %s224 = smul.addr %s223, 4
        %s225 = smul.addr %s224, 8
        %s226 = scalar_lea.vmem %s0, %s225
        %s227 = smul.u32 2, %s19
        %s228 = smul.u32 2, %s19
        %v229 = vld [vmem:[%s226] sm:$0xff]
        %v230 = vld [vmem:[%s226 + $0x8] sm:$0xff]
        %v231 = vld [vmem:[%s226 + $0x10] sm:$0xff]
        %v232 = vld [vmem:[%s226 + $0x18] sm:$0xff]
        %233 = vxpose.xlu0.b32.start [1/16] %v229, 128
        %234 = vxpose.xlu0.b32.cont [2/16] %v230, 128
        %235 = vxpose.xlu0.b32.cont [3/16] %v231, 128
        %236 = vxpose.xlu0.b32.cont [4/16] %v232, 128
        %237 = vxpose.xlu0.b32.cont [5/16] 0.0, 128
        %238 = vxpose.xlu0.b32.cont [6/16] 0.0, 128
        %239 = vxpose.xlu0.b32.cont [7/16] 0.0, 128
        %240 = vxpose.xlu0.b32.cont [8/16] 0.0, 128
        %241 = vxpose.xlu0.b32.cont [9/16] 0.0, 128
        %242 = vxpose.xlu0.b32.cont [10/16] 0.0, 128
        %243 = vxpose.xlu0.b32.cont [11/16] 0.0, 128
        %244 = vxpose.xlu0.b32.cont [12/16] 0.0, 128
        %245 = vxpose.xlu0.b32.cont [13/16] 0.0, 128
        %246 = vxpose.xlu0.b32.cont [14/16] 0.0, 128
        %247 = vxpose.xlu0.b32.cont [15/16] 0.0, 128
        %248 = vxpose.xlu0.b32.end [16/16] 0.0, 128
        %v249 = vpop.trf.xlu0
        %v250 = vpop.trf.xlu0
        %v251 = vpop.trf.xlu0
        %v252 = vpop.trf.xlu0
        %v253 = vpop.trf.xlu0
        %v254 = vpop.trf.xlu0
        %v255 = vpop.trf.xlu0
        %v256 = vpop.trf.xlu0
        %v257 = vpop.trf.xlu0
        %v258 = vpop.trf.xlu0
        %v259 = vpop.trf.xlu0
        %v260 = vpop.trf.xlu0
        %v261 = vpop.trf.xlu0
        %v262 = vpop.trf.xlu0
        %v263 = vpop.trf.xlu0
        %v264 = vpop.trf.xlu0
        %s265 = scalar_lea.vmem %s226, 32
        %v266 = vld [vmem:[%s265] sm:$0xff]
        %v267 = vld [vmem:[%s265 + $0x8] sm:$0xff]
        %v268 = vld [vmem:[%s265 + $0x10] sm:$0xff]
        %v269 = vld [vmem:[%s265 + $0x18] sm:$0xff]
        %270 = vxpose.xlu0.b32.start [1/16] %v266, 128
        %271 = vxpose.xlu0.b32.cont [2/16] %v267, 128
        %272 = vxpose.xlu0.b32.cont [3/16] %v268, 128
        %273 = vxpose.xlu0.b32.cont [4/16] %v269, 128
        %274 = vxpose.xlu0.b32.cont [5/16] 0.0, 128
        %275 = vxpose.xlu0.b32.cont [6/16] 0.0, 128
        %276 = vxpose.xlu0.b32.cont [7/16] 0.0, 128
        %277 = vxpose.xlu0.b32.cont [8/16] 0.0, 128
        %278 = vxpose.xlu0.b32.cont [9/16] 0.0, 128
        %279 = vxpose.xlu0.b32.cont [10/16] 0.0, 128
        %280 = vxpose.xlu0.b32.cont [11/16] 0.0, 128
        %281 = vxpose.xlu0.b32.cont [12/16] 0.0, 128
        %282 = vxpose.xlu0.b32.cont [13/16] 0.0, 128
        %283 = vxpose.xlu0.b32.cont [14/16] 0.0, 128
        %284 = vxpose.xlu0.b32.cont [15/16] 0.0, 128
        %285 = vxpose.xlu0.b32.end [16/16] 0.0, 128
        %v286 = vpop.trf.xlu0
        %v287 = vpop.trf.xlu0
        %v288 = vpop.trf.xlu0
        %v289 = vpop.trf.xlu0
        %v290 = vpop.trf.xlu0
        %v291 = vpop.trf.xlu0
        %v292 = vpop.trf.xlu0
        %v293 = vpop.trf.xlu0
        %v294 = vpop.trf.xlu0
        %v295 = vpop.trf.xlu0
        %v296 = vpop.trf.xlu0
        %v297 = vpop.trf.xlu0
        %v298 = vpop.trf.xlu0
        %v299 = vpop.trf.xlu0
        %v300 = vpop.trf.xlu0
        %v301 = vpop.trf.xlu0
        %v302 = vlaneseq
        %v303 = vshrl.u32 %v302, 7
        %v304 = vadd.s32 %v303, 8
        %v305 = vld [vmem:[%s1] sm:$0x7]
        %v306 = vld [vmem:[%s2] sm:$0x1]
        %v307 = vld [vmem:[%s3] sm:$0x1]
        %v308 = vld [vmem:[%s4] sm:$0x1]
        %v309 = vperm.slane %v305, 1
        %v310 = vmul.f32 %v249, %v309
        %v311 = vmul.f32 %v250, %v309
        %v312 = vmul.f32 %v286, %v309
        %v313 = vmul.f32 %v287, %v309
        %v314 = vrot.slane %v249, 7
        %v315 = vrot.slane %v250, 7
        %v316 = vrot.slane %v286, 7
        %v317 = vrot.slane %v287, 7
        %vm318 = vcmp.lt.s32.totalorder %v303, 1
        %v319 = vsel %vm318, %v316, %v317
        %v320 = vsel %vm318, %v315, %v316
        %v321 = vsel %vm318, %v314, %v315
        %v322 = vsel %vm318, %v317, %v314
        %vm323 = vcmp.ge.s32.totalorder %v303, 1
        %vm324 = vcmp.ge.s32.totalorder %v304, 1
        %v325 = vsel %vm323, %v322, 0.0
        %v326 = vsel %vm324, %v321, 0.0
        %v327 = vsel %vm323, %v320, 0.0
        %v328 = vsel %vm324, %v319, 0.0
        %v329 = vperm.slane %v305, 0
        %v330 = vmul.f32 %v325, %v329
        %v331 = vmul.f32 %v326, %v329
        %v332 = vmul.f32 %v327, %v329
        %v333 = vmul.f32 %v328, %v329
        %v334 = vadd.f32 %v310, %v330
        %v335 = vadd.f32 %v311, %v331
        %v336 = vadd.f32 %v312, %v332
        %v337 = vadd.f32 %v313, %v333
        %v338 = vrot.slane %v249, 1
        %v339 = vrot.slane %v250, 1
        %v340 = vrot.slane %v286, 1
        %v341 = vrot.slane %v287, 1
        %vm342 = vcmp.lt.s32.totalorder %v303, 7
        %v343 = vsel %vm342, %v340, %v341
        %v344 = vsel %vm342, %v339, %v340
        %v345 = vsel %vm342, %v338, %v339
        %v346 = vsel %vm342, %v341, %v338
        %vm347 = vcmp.lt.s32.totalorder %v303, 15
        %vm348 = vcmp.lt.s32.totalorder %v304, 15
        %v349 = vsel %vm347, %v345, 0.0
        %v350 = vsel %vm348, %v344, 0.0
        %v351 = vsel %vm347, %v343, 0.0
        %v352 = vsel %vm348, %v346, 0.0
        %v353 = vperm.slane %v305, 2
        %v354 = vmul.f32 %v349, %v353
        %v355 = vmul.f32 %v350, %v353
        %v356 = vmul.f32 %v351, %v353
        %v357 = vmul.f32 %v352, %v353
        %v358 = vadd.f32 %v334, %v354
        %v359 = vadd.f32 %v335, %v355
        %v360 = vadd.f32 %v336, %v356
        %v361 = vadd.f32 %v337, %v357
        %v363 = vperm.slane %v306, 0
        %v365 = vadd.f32 %v358, %v363
        %v366 = vadd.f32 %v359, %v363
        %v367 = vadd.f32 %v360, %v363
        %v368 = vadd.f32 %v361, %v363
        %vm369 = vcmask 261120
        %v370 = vsel %vm369, %v365, 0.0
        %371 = vadd.xlane.f32.xlu0 %v370
        %v372 = vpop.xlane.xlu0 %371
        %v373 = vsel %vm369, %v366, 0.0
        %374 = vadd.xlane.f32.xlu0 %v373
        %v375 = vpop.xlane.xlu0 %374
        %v376 = vsel %vm369, %v367, 0.0
        %377 = vadd.xlane.f32.xlu0 %v376
        %v378 = vpop.xlane.xlu0 %377
        %v379 = vsel %vm369, %v368, 0.0
        %380 = vadd.xlane.f32.xlu0 %v379
        %v381 = vpop.xlane.xlu0 %380
        %v382 = vmul.f32 %v372, 0.03125
        %v383 = vmul.f32 %v375, 0.03125
        %v384 = vmul.f32 %v378, 0.03125
        %v385 = vmul.f32 %v381, 0.03125
        %v386 = vmul.f32 %v365, %v365
        %v387 = vmul.f32 %v366, %v366
        %v388 = vmul.f32 %v367, %v367
        %v389 = vmul.f32 %v368, %v368
        %v390 = vsel %vm369, %v386, 0.0
        %391 = vadd.xlane.f32.xlu0 %v390
        %v392 = vpop.xlane.xlu0 %391
        %v393 = vsel %vm369, %v387, 0.0
        %394 = vadd.xlane.f32.xlu0 %v393
        %v395 = vpop.xlane.xlu0 %394
        %v396 = vsel %vm369, %v388, 0.0
        %397 = vadd.xlane.f32.xlu0 %v396
        %v398 = vpop.xlane.xlu0 %397
        %v399 = vsel %vm369, %v389, 0.0
        %400 = vadd.xlane.f32.xlu0 %v399
        %v401 = vpop.xlane.xlu0 %400
        %v402 = vmul.f32 %v392, 0.03125
        %v403 = vmul.f32 %v395, 0.03125
        %v404 = vmul.f32 %v398, 0.03125
        %v405 = vmul.f32 %v401, 0.03125
        %v406 = vmul.f32 %v382, %v382
        %v407 = vmul.f32 %v383, %v383
        %v408 = vmul.f32 %v384, %v384
        %v409 = vmul.f32 %v385, %v385
        %v410 = vsub.f32 %v402, %v406
        %v411 = vsub.f32 %v403, %v407
        %v412 = vsub.f32 %v404, %v408
        %v413 = vsub.f32 %v405, %v409
        %v414 = vmax.f32 %v410, 0.0
        %v415 = vmax.f32 %v411, 0.0
        %v416 = vmax.f32 %v412, 0.0
        %v417 = vmax.f32 %v413, 0.0
        %v418 = vsub.f32 %v365, %v382
        %v419 = vsub.f32 %v366, %v383
        %v420 = vsub.f32 %v367, %v384
        %v421 = vsub.f32 %v368, %v385
        %v422 = vadd.f32 %v414, 1e-05
        %v423 = vadd.f32 %v415, 1e-05
        %v424 = vadd.f32 %v416, 1e-05
        %v425 = vadd.f32 %v417, 1e-05
        %v426 = vrsqrt.pop %v422
        %v427 = vmul.f32 %v426, %v422
        %v428 = vmul.f32 %v427, %v426
        %v429 = vmul.f32 0.5, %v428
        %v430 = vsub.f32 1.5, %v429
        %v431 = vmul.f32 %v426, %v430
        %vm432 = vweird.f32 %v422
        %vm433 = vweird.f32 %v426
        %vm434 = vmor %vm432, %vm433
        %v435 = vsel %vm434, %v426, %v431
        %v436 = vrsqrt.pop %v423
        %v437 = vmul.f32 %v436, %v423
        %v438 = vmul.f32 %v437, %v436
        %v439 = vmul.f32 0.5, %v438
        %v440 = vsub.f32 1.5, %v439
        %v441 = vmul.f32 %v436, %v440
        %vm442 = vweird.f32 %v423
        %vm443 = vweird.f32 %v436
        %vm444 = vmor %vm442, %vm443
        %v445 = vsel %vm444, %v436, %v441
        %v446 = vrsqrt.pop %v424
        %v447 = vmul.f32 %v446, %v424
        %v448 = vmul.f32 %v447, %v446
        %v449 = vmul.f32 0.5, %v448
        %v450 = vsub.f32 1.5, %v449
        %v451 = vmul.f32 %v446, %v450
        %vm452 = vweird.f32 %v424
        %vm453 = vweird.f32 %v446
        %vm454 = vmor %vm452, %vm453
        %v455 = vsel %vm454, %v446, %v451
        %v456 = vrsqrt.pop %v425
        %v457 = vmul.f32 %v456, %v425
        %v458 = vmul.f32 %v457, %v456
        %v459 = vmul.f32 0.5, %v458
        %v460 = vsub.f32 1.5, %v459
        %v461 = vmul.f32 %v456, %v460
        %vm462 = vweird.f32 %v425
        %vm463 = vweird.f32 %v456
        %vm464 = vmor %vm462, %vm463
        %v465 = vsel %vm464, %v456, %v461
        %v466 = vmul.f32 %v418, %v435
        %v467 = vmul.f32 %v419, %v445
        %v468 = vmul.f32 %v420, %v455
        %v469 = vmul.f32 %v421, %v465
        %v471 = vperm.slane %v307, 0
        %v473 = vmul.f32 %v466, %v471
        %v474 = vmul.f32 %v467, %v471
        %v475 = vmul.f32 %v468, %v471
        %v476 = vmul.f32 %v469, %v471
        %v478 = vperm.slane %v308, 0
        %v480 = vadd.f32 %v473, %v478
        %v481 = vadd.f32 %v474, %v478
        %v482 = vadd.f32 %v475, %v478
        %v483 = vadd.f32 %v476, %v478
        %484 = vst.msk [vmem:[%s220] sm:$0xff] %vm369, %v480
        %485 = vst.msk [vmem:[%s220 + $0x8] sm:$0xff] %vm369, %v481
        %486 = vst.msk [vmem:[%s220 + $0x10] sm:$0xff] %vm369, %v482
        %487 = vst.msk [vmem:[%s220 + $0x18] sm:$0xff] %vm369, %v483
        %s488 = sand.u32 %s137, 1
        %s489 = scalar_lea.sflag [#allocation3], %s488
        %s490 = sand.u32 %s137, 1
        %s491 = smul.addr %s490, 32
        %s492 = scalar_lea.vmem [#allocation2], %s491
        // Predicated region
        $region41: #{tpu_custom_call.1} parent=39 // pred_check
          %p493 = pneg %p147
        $region42: #{tpu_custom_call.1} parent=39 // pred_check_branch
          %495 = sbr.rel (%p493) target = $region44
        $region43: #{tpu_custom_call.1} parent=39 // pred_region
          %s496 = smul.u32 2, %s19
          %498 = vsyncadd %s489, 0
          %s499 = smul.addr %s496, 2
          %s500 = smul.addr %s499, 8
          %s501 = scalar_lea.hbm %s5, %s500
          %s502 = sshll.u32 %s492, 4
          %s503 = int_to_ptr.vmem [resolvable:$true] %s502
          %s504 = sshll.u32 %s501, 4
          %s505 = int_to_ptr.hbm [resolvable:$true] %s504
          %510 = dma.vmem_to_hbm [thread:$0]  %s503, 512, %s505, %s489, 128, 128, 8
        $region44: #{tpu_custom_call.1} parent=39 // pred_fallthru
          _
      $region40: #{tpu_custom_call.1} parent=5 // pred_fallthru
        _
      %p511 = scmp.le.s32.totalorder 2, %s14
      // Predicated region
      $region45: #{tpu_custom_call.1} parent=5 // pred_check
        %p512 = pneg %p511
      $region46: #{tpu_custom_call.1} parent=5 // pred_check_branch
        %514 = sbr.rel (%p512) target = $region48
      $region47: #{tpu_custom_call.1} parent=5 // pred_region
        %s515 = ssub.s32 %s14, 2
        // Predicated region
        $region49: #{tpu_custom_call.1} parent=47 // pred_check
          %p516 = pneg %p153
        $region50: #{tpu_custom_call.1} parent=47 // pred_check_branch
          %518 = sbr.rel (%p516) target = $region52
        $region51: #{tpu_custom_call.1} parent=47 // pred_region
          %s519 = sand.u32 %s138, 1
          %s520 = scalar_lea.sflag [#allocation3], %s519
          %s521 = sand.u32 %s138, 1
          %s522 = smul.addr %s521, 32
          %s523 = scalar_lea.vmem [#allocation2], %s522
          %525 = dma.done %s520, 512
        $region52: #{tpu_custom_call.1} parent=47 // pred_fallthru
          _
      $region48: #{tpu_custom_call.1} parent=5 // pred_fallthru
        _
    $region6: #{tpu_custom_call.1} parent=1 // loop_footer
      %s18 = sadd.s32 1, %s14
    $region7: #{tpu_custom_call.1} parent=1 // loop_footer_branch
      %13 = sbr.rel target = $region3
    $region8: #{tpu_custom_call.1} parent=1 // loop_exit
      _
    %526 = vsyncpa [#allocation3], 1
    %s527 = scalar_lea.sflag [#allocation3], 1
    %528 = vsyncpa %s527, 1

</llo_original>
